<compile_context>
chip_gen: v5e
topology: v5e:2x2
jax: 0.10.0
libtpu: 0.0.40
codegen_flags: <defaults>
</compile_context>

<pallas_src>
import functools

import jax
import jax.numpy as jnp
from jax.experimental import pallas as pl
from jax.experimental.pallas import tpu as pltpu


def _basic_block_kernel(x_ref, wb1_ref, wb2_ref,
                        g1_ref, b1_ref, g2_ref, b2_ref,
                        o_ref, pad_ref, *, n, h, w, c, stepsize):
    """Whole BasicBlock forward, VMEM resident, folded (N, H, W*C) layout.

    x_ref   : (N, H, W*C)          input, lane index = w*C + ci
    wb*_ref : (3, W*C, W*C) bf16   banded conv weights, one per ky tap row
                                   (band truncation = x-direction zero pad)
    g*/b*   : (1, W*C)             BN gamma/beta tiled over W
    o_ref   : (N, H, W*C)          output (lane-dense, unmasked stores)
    pad_ref : (N, H+2, W*C) VMEM   scratch with a 1-row vertical halo only
    """
    wc = w * c
    m = n * h
    eps = 1e-5
    inv_cnt = jnp.float32(1.0 / (n * h * w))
    w_log2 = w.bit_length() - 1          # W is a power of two (asserted below)

    # Zero only the vertical halo rows; interior rows 1..H are fully
    # overwritten right after (x-padding is handled by the banded weights).
    zrow = jnp.zeros((n, 1, wc), jnp.float32)
    pad_ref[:, 0:1, :] = zrow
    pad_ref[:, h + 1:h + 2, :] = zrow
    pad_ref[:, 1:h + 1, :] = x_ref[...]

    def conv3x3(wb_ref):
        # 3 banded taps: each is one lane-dense (N*H, WC)@(WC, WC) bf16 MXU
        # matmul with f32 accumulation; acc is only a handful of vregs.
        acc = jnp.zeros((m, wc), jnp.float32)
        for ky in range(3):
            patch = pad_ref[:, ky:ky + h, :].reshape(m, wc).astype(jnp.bfloat16)
            acc = acc + jnp.dot(patch, wb_ref[ky],
                                preferred_element_type=jnp.float32)
        return acc

    def lane_group_allreduce(row):
        # Sum over the W groups of the folded lane axis and broadcast the
        # per-channel value back to every w*C+ci lane.  Roll-add tree on the
        # XLU; shifts are multiples of C so channel alignment is preserved.
        s = row
        shift = c
        for _ in range(w_log2):
            s = s + pltpu.roll(s, shift=shift, axis=1)
            shift *= 2
        return s

    def batchnorm(acc, g, b):
        # Train-mode BN, biased batch variance, all arithmetic in f32.
        rowsum = jnp.sum(acc, axis=0, keepdims=True)                 # (1, WC)
        mean = lane_group_allreduce(rowsum) * inv_cnt                # (1, WC)
        cen = acc - mean
        sqsum = jnp.sum(cen * cen, axis=0, keepdims=True)
        var = lane_group_allreduce(sqsum) * inv_cnt
        return cen * jax.lax.rsqrt(var + eps) * g + b

    # ---- conv1 -> bn1 -> relu ----
    y1 = jnp.maximum(batchnorm(conv3x3(wb1_ref), g1_ref[...], b1_ref[...]), 0.0)

    # Reuse the padded scratch for conv2's input (halo rows are still zero;
    # the interior is fully overwritten so no stale x remains).
    pad_ref[:, 1:h + 1, :] = y1.reshape(n, h, wc)

    # ---- conv2 -> bn2 -> *stepsize -> +x -> relu ----
    y2 = batchnorm(conv3x3(wb2_ref), g2_ref[...], b2_ref[...])
    out = jnp.maximum(x_ref[...].reshape(m, wc) + jnp.float32(stepsize) * y2, 0.0)
    o_ref[...] = out.reshape(n, h, wc)


def basic_block(x_nchw, w1, w2, g1, b1, g2, b2, *, stepsize=1.0):
    """BasicBlock forward. x_nchw: (N, C, H, W) float32; conv weights HWIO."""
    N, C, H, W = x_nchw.shape
    Cm = w1.shape[-1]
    assert w1.shape == (3, 3, C, Cm) and w2.shape == (3, 3, Cm, Cm)
    assert Cm == C, "residual add requires inplanes == planes (stride=1)"
    assert W & (W - 1) == 0 and W > 0, "roll-add BN reduce assumes W is a power of two"
    WC = W * C
    assert WC == 128, "lane-dense design assumes W*C == 128"

    # NCHW -> folded (N, H, W*C) channels-last layout (thin XLA glue; the
    # vertical halo padding happens inside the kernel, not in HBM).
    x_f = jnp.transpose(x_nchw, (0, 2, 3, 1)).reshape(N, H, WC).astype(jnp.float32)

    # Banded per-ky weights: B_ky[j_in*C+ci, j_out*C+co] = w[ky, j_in-j_out+1, ci, co]
    # for |j_in - j_out| <= 1, else 0.  Edge truncation of the band implements
    # the x-direction zero padding, so one 3x3 conv = 3 lane-dense matmuls.
    dj = jnp.arange(W)[:, None] - jnp.arange(W)[None, :]            # j_in - j_out

    def banded(wk):
        mats = []
        for ky in range(3):
            b = jnp.zeros((W, C, W, C), jnp.float32)
            for kx in range(3):
                sel = (dj == (kx - 1)).astype(jnp.float32)          # (W_in, W_out)
                b = b + sel[:, None, :, None] * \
                    wk[ky, kx].astype(jnp.float32)[None, :, None, :]
            mats.append(b.reshape(WC, WC))
        # Ship as bf16: these are MXU operands only -> native MXU precision
        # and ~6x less weight HBM traffic than the old f32 kron form.
        return jnp.stack(mats).astype(jnp.bfloat16)                 # (3, WC, WC)

    wb1 = banded(w1)
    wb2 = banded(w2)

    # BN gamma/beta tiled over the W groups of the folded lane axis (f32).
    tile = lambda v: jnp.tile(v.astype(jnp.float32).reshape(-1), W).reshape(1, WC)
    g1_, b1_, g2_, b2_ = map(tile, (g1, b1, g2, b2))

    kernel = functools.partial(_basic_block_kernel, n=N, h=H, w=W, c=C,
                               stepsize=float(stepsize))

    full = lambda *shape: pl.BlockSpec(shape, lambda i: (0,) * len(shape))

    # TODO(synk): grid=(1,) runs on one TensorCore, so on v7x the second TC is
    # idle.  For larger N/H/W, tile H into row-bands behind a "parallel"
    # leading grid axis with a separate two-pass BN-stats reduction (batch-stat
    # BN couples every pixel, a naive split is wrong), budget VMEM against
    # v7x's 64 MiB physical / v5e's 16 MiB scoped default, mark the
    # grid-invariant weight specs pipeline_mode=pl.Buffered(1), and set
    # vmem_limit_bytes explicitly.  At this toy shape the whole working set
    # (<300 KiB) is VMEM resident and a single grid point is cheapest.
    out_f = pl.pallas_call(
        kernel,
        out_shape=jax.ShapeDtypeStruct((N, H, WC), jnp.float32),
        grid=(1,),
        in_specs=[
            full(N, H, WC),      # x (folded, unpadded)
            full(3, WC, WC),     # conv1 banded taps (bf16)
            full(3, WC, WC),     # conv2 banded taps (bf16)
            full(1, WC),         # gamma1 (tiled over W)
            full(1, WC),         # beta1
            full(1, WC),         # gamma2
            full(1, WC),         # beta2
        ],
        out_specs=full(N, H, WC),
        scratch_shapes=[pltpu.VMEM((N, H + 2, WC), jnp.float32)],
        compiler_params=pltpu.CompilerParams(
            dimension_semantics=("arbitrary",)),
    )(x_f, wb1, wb2, g1_, b1_, g2_, b2_)

    return jnp.transpose(out_f.reshape(N, H, W, C), (0, 3, 1, 2))


def _reference(x_nchw, w1, w2, g1, b1, g2, b2, stepsize=1.0):
    """Pure-JAX f32 reference (lax.conv, train-mode BN) for correctness check."""
    eps = 1e-5

    def conv(x, w):  # x NCHW, w HWIO -> OIHW
        w_oihw = jnp.transpose(w, (3, 2, 0, 1))
        return jax.lax.conv_general_dilated(
            x, w_oihw, window_strides=(1, 1), padding=((1, 1), (1, 1)),
            dimension_numbers=("NCHW", "OIHW", "NCHW"),
            precision=jax.lax.Precision.HIGHEST)

    def bn(x, g, b):
        mean = jnp.mean(x, axis=(0, 2, 3), keepdims=True)
        var = jnp.mean((x - mean) ** 2, axis=(0, 2, 3), keepdims=True)
        return ((x - mean) / jnp.sqrt(var + eps)) * g.reshape(1, -1, 1, 1) \
            + b.reshape(1, -1, 1, 1)

    r = jax.nn.relu(bn(conv(x_nchw, w1), g1, b1))
    r = bn(conv(r, w2), g2, b2) * stepsize
    return jax.nn.relu(x_nchw + r)


if __name__ == "__main__":
    key = jax.random.PRNGKey(0)
    N, C, H, W = 2, 8, 16, 16          # inplanes == planes, stride = 1; W*C = 128
    stepsize = 0.5

    k_x, k_w1, k_w2 = jax.random.split(key, 3)
    x = jax.random.normal(k_x, (N, C, H, W), dtype=jnp.float32)
    # Conv weights in HWIO; He-style scaling, deterministic from PRNGKey(0).
    fan = 3 * 3 * C
    w1 = jax.random.normal(k_w1, (3, 3, C, C), dtype=jnp.float32) * (2.0 / fan) ** 0.5
    w2 = jax.random.normal(k_w2, (3, 3, C, C), dtype=jnp.float32) * (2.0 / fan) ** 0.5
    # BatchNorm2d default affine init: gamma = 1, beta = 0.
    g1 = jnp.ones((C,), jnp.float32)
    b1 = jnp.zeros((C,), jnp.float32)
    g2 = jnp.ones((C,), jnp.float32)
    b2 = jnp.zeros((C,), jnp.float32)

    out = basic_block(x, w1, w2, g1, b1, g2, b2, stepsize=stepsize)
    out = jax.block_until_ready(out)

    ref = _reference(x, w1, w2, g1, b1, g2, b2, stepsize=stepsize)
    assert out.shape == (N, C, H, W)
    # bf16 MXU operands (f32 accumulation + f32 BN/elementwise) vs f32
    # reference -> use a bf16-appropriate tolerance.
    assert jnp.allclose(out, ref, atol=1e-2, rtol=1e-2), "mismatch vs reference"

    print("KERNEL_OK")
</pallas_src>

<mosaic_0001>
module attributes {stable_mosaic.version = 11 : i64} {
  func.func @_basic_block_kernel(%arg0: i32, %arg1: memref<2x16x128xf32, #tpu.memory_space<vmem>>, %arg2: memref<3x128x128xbf16, #tpu.memory_space<vmem>>, %arg3: memref<3x128x128xbf16, #tpu.memory_space<vmem>>, %arg4: memref<1x128xf32, #tpu.memory_space<vmem>>, %arg5: memref<1x128xf32, #tpu.memory_space<vmem>>, %arg6: memref<1x128xf32, #tpu.memory_space<vmem>>, %arg7: memref<1x128xf32, #tpu.memory_space<vmem>>, %arg8: memref<2x16x128xf32, #tpu.memory_space<vmem>>, %arg9: memref<2x18x128xf32, #tpu.memory_space<vmem>>) attributes {dimension_semantics = [#tpu.dimension_semantics<arbitrary>], iteration_bounds = array<i64: 1>, scalar_prefetch = 0 : i64, scratch_operands = 1 : i64, tpu.core_type = #tpu.core_type<tc>, window_params = [{pipeline_mode = #tpu.pipeline_mode<synchronous>, transform_indices = @transform_0, window_bounds = array<i64: 2, 16, 128>}, {pipeline_mode = #tpu.pipeline_mode<synchronous>, transform_indices = @transform_1, window_bounds = array<i64: 3, 128, 128>}, {pipeline_mode = #tpu.pipeline_mode<synchronous>, transform_indices = @transform_2, window_bounds = array<i64: 3, 128, 128>}, {pipeline_mode = #tpu.pipeline_mode<synchronous>, transform_indices = @transform_3, window_bounds = array<i64: 1, 128>}, {pipeline_mode = #tpu.pipeline_mode<synchronous>, transform_indices = @transform_4, window_bounds = array<i64: 1, 128>}, {pipeline_mode = #tpu.pipeline_mode<synchronous>, transform_indices = @transform_5, window_bounds = array<i64: 1, 128>}, {pipeline_mode = #tpu.pipeline_mode<synchronous>, transform_indices = @transform_6, window_bounds = array<i64: 1, 128>}, {pipeline_mode = #tpu.pipeline_mode<synchronous>, transform_indices = @transform_7, window_bounds = array<i64: 2, 16, 128>}]} {
    %cst = arith.constant 0.000000e+00 : f32
    %0 = vector.broadcast %cst : f32 to vector<2x1x128xf32>
    %c0 = arith.constant 0 : index
    %c0_0 = arith.constant 0 : index
    %c0_1 = arith.constant 0 : index
    %1 = vector.load %arg9[%c0, %c0_0, %c0_1] : memref<2x18x128xf32, #tpu.memory_space<vmem>>, vector<2x1x128xf32>
    tpu.vector_store %arg9[%c0, %c0_0, %c0_1], %0 {strides = array<i32>} : memref<2x18x128xf32, #tpu.memory_space<vmem>>, vector<2x1x128xf32>,
    %c0_2 = arith.constant 0 : index
    %c17 = arith.constant 17 : index
    %c0_3 = arith.constant 0 : index
    %2 = vector.load %arg9[%c0_2, %c17, %c0_3] : memref<2x18x128xf32, #tpu.memory_space<vmem>>, vector<2x1x128xf32>
    tpu.vector_store %arg9[%c0_2, %c17, %c0_3], %0 {strides = array<i32>} : memref<2x18x128xf32, #tpu.memory_space<vmem>>, vector<2x1x128xf32>,
    %c0_4 = arith.constant 0 : index
    %c0_5 = arith.constant 0 : index
    %c0_6 = arith.constant 0 : index
    %3 = vector.load %arg1[%c0_4, %c0_5, %c0_6] : memref<2x16x128xf32, #tpu.memory_space<vmem>>, vector<2x16x128xf32>
    %c0_7 = arith.constant 0 : index
    %c1 = arith.constant 1 : index
    %c0_8 = arith.constant 0 : index
    %4 = vector.load %arg9[%c0_7, %c1, %c0_8] : memref<2x18x128xf32, #tpu.memory_space<vmem>>, vector<2x16x128xf32>
    tpu.vector_store %arg9[%c0_7, %c1, %c0_8], %3 {strides = array<i32>} : memref<2x18x128xf32, #tpu.memory_space<vmem>>, vector<2x16x128xf32>,
    %cst_9 = arith.constant 0.000000e+00 : f32
    %5 = vector.broadcast %cst_9 : f32 to vector<32x128xf32>
    %c0_10 = arith.constant 0 : index
    %c0_11 = arith.constant 0 : index
    %c0_12 = arith.constant 0 : index
    %6 = vector.load %arg9[%c0_10, %c0_11, %c0_12] : memref<2x18x128xf32, #tpu.memory_space<vmem>>, vector<2x16x128xf32>
    %7 = vector.shape_cast %6 : vector<2x16x128xf32> to vector<32x128xf32>
    %8 = arith.truncf %7 : vector<32x128xf32> to vector<32x128xbf16>
    %c0_13 = arith.constant 0 : index
    %c0_14 = arith.constant 0 : index
    %c0_15 = arith.constant 0 : index
    %9 = vector.load %arg2[%c0_13, %c0_14, %c0_15] : memref<3x128x128xbf16, #tpu.memory_space<vmem>>, vector<1x128x128xbf16>
    %10 = vector.shape_cast %9 : vector<1x128x128xbf16> to vector<128x128xbf16>
    %cst_16 = arith.constant dense<0.000000e+00> : vector<32x128xf32>
    %11 = tpu.matmul %8, %10, %cst_16 {dimension_numbers = #tpu.dot_dimension_numbers<[1], [0], [0], [1], [0, 0, 1, 1], [], []>} : vector<32x128xbf16>, vector<128x128xbf16>, vector<32x128xf32> -> vector<32x128xf32>
    %12 = arith.addf %5, %11 : vector<32x128xf32>
    %c0_17 = arith.constant 0 : index
    %c1_18 = arith.constant 1 : index
    %c0_19 = arith.constant 0 : index
    %13 = vector.load %arg9[%c0_17, %c1_18, %c0_19] : memref<2x18x128xf32, #tpu.memory_space<vmem>>, vector<2x16x128xf32>
    %14 = vector.shape_cast %13 : vector<2x16x128xf32> to vector<32x128xf32>
    %15 = arith.truncf %14 : vector<32x128xf32> to vector<32x128xbf16>
    %c1_20 = arith.constant 1 : index
    %c0_21 = arith.constant 0 : index
    %c0_22 = arith.constant 0 : index
    %16 = vector.load %arg2[%c1_20, %c0_21, %c0_22] : memref<3x128x128xbf16, #tpu.memory_space<vmem>>, vector<1x128x128xbf16>
    %17 = vector.shape_cast %16 : vector<1x128x128xbf16> to vector<128x128xbf16>
    %cst_23 = arith.constant dense<0.000000e+00> : vector<32x128xf32>
    %18 = tpu.matmul %15, %17, %cst_23 {dimension_numbers = #tpu.dot_dimension_numbers<[1], [0], [0], [1], [0, 0, 1, 1], [], []>} : vector<32x128xbf16>, vector<128x128xbf16>, vector<32x128xf32> -> vector<32x128xf32>
    %19 = arith.addf %12, %18 : vector<32x128xf32>
    %c0_24 = arith.constant 0 : index
    %c2 = arith.constant 2 : index
    %c0_25 = arith.constant 0 : index
    %20 = vector.load %arg9[%c0_24, %c2, %c0_25] : memref<2x18x128xf32, #tpu.memory_space<vmem>>, vector<2x16x128xf32>
    %21 = vector.shape_cast %20 : vector<2x16x128xf32> to vector<32x128xf32>
    %22 = arith.truncf %21 : vector<32x128xf32> to vector<32x128xbf16>
    %c2_26 = arith.constant 2 : index
    %c0_27 = arith.constant 0 : index
    %c0_28 = arith.constant 0 : index
    %23 = vector.load %arg2[%c2_26, %c0_27, %c0_28] : memref<3x128x128xbf16, #tpu.memory_space<vmem>>, vector<1x128x128xbf16>
    %24 = vector.shape_cast %23 : vector<1x128x128xbf16> to vector<128x128xbf16>
    %cst_29 = arith.constant dense<0.000000e+00> : vector<32x128xf32>
    %25 = tpu.matmul %22, %24, %cst_29 {dimension_numbers = #tpu.dot_dimension_numbers<[1], [0], [0], [1], [0, 0, 1, 1], [], []>} : vector<32x128xbf16>, vector<128x128xbf16>, vector<32x128xf32> -> vector<32x128xf32>
    %26 = arith.addf %19, %25 : vector<32x128xf32>
    %c0_30 = arith.constant 0 : index
    %c0_31 = arith.constant 0 : index
    %27 = vector.load %arg4[%c0_30, %c0_31] : memref<1x128xf32, #tpu.memory_space<vmem>>, vector<1x128xf32>
    %c0_32 = arith.constant 0 : index
    %c0_33 = arith.constant 0 : index
    %28 = vector.load %arg5[%c0_32, %c0_33] : memref<1x128xf32, #tpu.memory_space<vmem>>, vector<1x128xf32>
    %cst_34 = arith.constant dense<0.000000e+00> : vector<128xf32>
    %29 = vector.multi_reduction <add>, %26, %cst_34 [0] : vector<32x128xf32> to vector<128xf32>
    %30 = vector.shape_cast %29 : vector<128xf32> to vector<1x128xf32>
    %c8_i32 = arith.constant 8 : i32
    %31 = tpu.dynamic_rotate %30 by %c8_i32 dim 1 : vector<1x128xf32>, i32 -> vector<1x128xf32>
    %32 = arith.addf %30, %31 : vector<1x128xf32>
    %c16_i32 = arith.constant 16 : i32
    %33 = tpu.dynamic_rotate %32 by %c16_i32 dim 1 : vector<1x128xf32>, i32 -> vector<1x128xf32>
    %34 = arith.addf %32, %33 : vector<1x128xf32>
    %c32_i32 = arith.constant 32 : i32
    %35 = tpu.dynamic_rotate %34 by %c32_i32 dim 1 : vector<1x128xf32>, i32 -> vector<1x128xf32>
    %36 = arith.addf %34, %35 : vector<1x128xf32>
    %c64_i32 = arith.constant 64 : i32
    %37 = tpu.dynamic_rotate %36 by %c64_i32 dim 1 : vector<1x128xf32>, i32 -> vector<1x128xf32>
    %38 = arith.addf %36, %37 : vector<1x128xf32>
    %cst_35 = arith.constant 0.001953125 : f32
    %39 = vector.broadcast %cst_35 : f32 to vector<1x128xf32>
    %40 = arith.mulf %38, %39 : vector<1x128xf32>
    %41 = vector.broadcast %40 : vector<1x128xf32> to vector<32x128xf32>
    %42 = arith.subf %26, %41 : vector<32x128xf32>
    %43 = arith.mulf %42, %42 : vector<32x128xf32>
    %cst_36 = arith.constant dense<0.000000e+00> : vector<128xf32>
    %44 = vector.multi_reduction <add>, %43, %cst_36 [0] : vector<32x128xf32> to vector<128xf32>
    %45 = vector.shape_cast %44 : vector<128xf32> to vector<1x128xf32>
    %c8_i32_37 = arith.constant 8 : i32
    %46 = tpu.dynamic_rotate %45 by %c8_i32_37 dim 1 : vector<1x128xf32>, i32 -> vector<1x128xf32>
    %47 = arith.addf %45, %46 : vector<1x128xf32>
    %c16_i32_38 = arith.constant 16 : i32
    %48 = tpu.dynamic_rotate %47 by %c16_i32_38 dim 1 : vector<1x128xf32>, i32 -> vector<1x128xf32>
    %49 = arith.addf %47, %48 : vector<1x128xf32>
    %c32_i32_39 = arith.constant 32 : i32
    %50 = tpu.dynamic_rotate %49 by %c32_i32_39 dim 1 : vector<1x128xf32>, i32 -> vector<1x128xf32>
    %51 = arith.addf %49, %50 : vector<1x128xf32>
    %c64_i32_40 = arith.constant 64 : i32
    %52 = tpu.dynamic_rotate %51 by %c64_i32_40 dim 1 : vector<1x128xf32>, i32 -> vector<1x128xf32>
    %53 = arith.addf %51, %52 : vector<1x128xf32>
    %cst_41 = arith.constant 0.001953125 : f32
    %54 = vector.broadcast %cst_41 : f32 to vector<1x128xf32>
    %55 = arith.mulf %53, %54 : vector<1x128xf32>
    %cst_42 = arith.constant 9.99999974E-6 : f32
    %56 = vector.broadcast %cst_42 : f32 to vector<1x128xf32>
    %57 = arith.addf %55, %56 : vector<1x128xf32>
    %58 = math.rsqrt %57 : vector<1x128xf32>
    %59 = vector.broadcast %58 : vector<1x128xf32> to vector<32x128xf32>
    %60 = arith.mulf %42, %59 : vector<32x128xf32>
    %61 = vector.broadcast %27 : vector<1x128xf32> to vector<32x128xf32>
    %62 = arith.mulf %60, %61 : vector<32x128xf32>
    %63 = vector.broadcast %28 : vector<1x128xf32> to vector<32x128xf32>
    %64 = arith.addf %62, %63 : vector<32x128xf32>
    %cst_43 = arith.constant 0.000000e+00 : f32
    %65 = vector.broadcast %cst_43 : f32 to vector<32x128xf32>
    %66 = arith.maximumf %64, %65 : vector<32x128xf32>
    %67 = vector.shape_cast %66 : vector<32x128xf32> to vector<2x16x128xf32>
    %c0_44 = arith.constant 0 : index
    %c1_45 = arith.constant 1 : index
    %c0_46 = arith.constant 0 : index
    %68 = vector.load %arg9[%c0_44, %c1_45, %c0_46] : memref<2x18x128xf32, #tpu.memory_space<vmem>>, vector<2x16x128xf32>
    tpu.vector_store %arg9[%c0_44, %c1_45, %c0_46], %67 {strides = array<i32>} : memref<2x18x128xf32, #tpu.memory_space<vmem>>, vector<2x16x128xf32>,
    %cst_47 = arith.constant 0.000000e+00 : f32
    %69 = vector.broadcast %cst_47 : f32 to vector<32x128xf32>
    %c0_48 = arith.constant 0 : index
    %c0_49 = arith.constant 0 : index
    %c0_50 = arith.constant 0 : index
    %70 = vector.load %arg9[%c0_48, %c0_49, %c0_50] : memref<2x18x128xf32, #tpu.memory_space<vmem>>, vector<2x16x128xf32>
    %71 = vector.shape_cast %70 : vector<2x16x128xf32> to vector<32x128xf32>
    %72 = arith.truncf %71 : vector<32x128xf32> to vector<32x128xbf16>
    %c0_51 = arith.constant 0 : index
    %c0_52 = arith.constant 0 : index
    %c0_53 = arith.constant 0 : index
    %73 = vector.load %arg3[%c0_51, %c0_52, %c0_53] : memref<3x128x128xbf16, #tpu.memory_space<vmem>>, vector<1x128x128xbf16>
    %74 = vector.shape_cast %73 : vector<1x128x128xbf16> to vector<128x128xbf16>
    %cst_54 = arith.constant dense<0.000000e+00> : vector<32x128xf32>
    %75 = tpu.matmul %72, %74, %cst_54 {dimension_numbers = #tpu.dot_dimension_numbers<[1], [0], [0], [1], [0, 0, 1, 1], [], []>} : vector<32x128xbf16>, vector<128x128xbf16>, vector<32x128xf32> -> vector<32x128xf32>
    %76 = arith.addf %69, %75 : vector<32x128xf32>
    %c0_55 = arith.constant 0 : index
    %c1_56 = arith.constant 1 : index
    %c0_57 = arith.constant 0 : index
    %77 = vector.load %arg9[%c0_55, %c1_56, %c0_57] : memref<2x18x128xf32, #tpu.memory_space<vmem>>, vector<2x16x128xf32>
    %78 = vector.shape_cast %77 : vector<2x16x128xf32> to vector<32x128xf32>
    %79 = arith.truncf %78 : vector<32x128xf32> to vector<32x128xbf16>
    %c1_58 = arith.constant 1 : index
    %c0_59 = arith.constant 0 : index
    %c0_60 = arith.constant 0 : index
    %80 = vector.load %arg3[%c1_58, %c0_59, %c0_60] : memref<3x128x128xbf16, #tpu.memory_space<vmem>>, vector<1x128x128xbf16>
    %81 = vector.shape_cast %80 : vector<1x128x128xbf16> to vector<128x128xbf16>
    %cst_61 = arith.constant dense<0.000000e+00> : vector<32x128xf32>
    %82 = tpu.matmul %79, %81, %cst_61 {dimension_numbers = #tpu.dot_dimension_numbers<[1], [0], [0], [1], [0, 0, 1, 1], [], []>} : vector<32x128xbf16>, vector<128x128xbf16>, vector<32x128xf32> -> vector<32x128xf32>
    %83 = arith.addf %76, %82 : vector<32x128xf32>
    %c0_62 = arith.constant 0 : index
    %c2_63 = arith.constant 2 : index
    %c0_64 = arith.constant 0 : index
    %84 = vector.load %arg9[%c0_62, %c2_63, %c0_64] : memref<2x18x128xf32, #tpu.memory_space<vmem>>, vector<2x16x128xf32>
    %85 = vector.shape_cast %84 : vector<2x16x128xf32> to vector<32x128xf32>
    %86 = arith.truncf %85 : vector<32x128xf32> to vector<32x128xbf16>
    %c2_65 = arith.constant 2 : index
    %c0_66 = arith.constant 0 : index
    %c0_67 = arith.constant 0 : index
    %87 = vector.load %arg3[%c2_65, %c0_66, %c0_67] : memref<3x128x128xbf16, #tpu.memory_space<vmem>>, vector<1x128x128xbf16>
    %88 = vector.shape_cast %87 : vector<1x128x128xbf16> to vector<128x128xbf16>
    %cst_68 = arith.constant dense<0.000000e+00> : vector<32x128xf32>
    %89 = tpu.matmul %86, %88, %cst_68 {dimension_numbers = #tpu.dot_dimension_numbers<[1], [0], [0], [1], [0, 0, 1, 1], [], []>} : vector<32x128xbf16>, vector<128x128xbf16>, vector<32x128xf32> -> vector<32x128xf32>
    %90 = arith.addf %83, %89 : vector<32x128xf32>
    %c0_69 = arith.constant 0 : index
    %c0_70 = arith.constant 0 : index
    %91 = vector.load %arg6[%c0_69, %c0_70] : memref<1x128xf32, #tpu.memory_space<vmem>>, vector<1x128xf32>
    %c0_71 = arith.constant 0 : index
    %c0_72 = arith.constant 0 : index
    %92 = vector.load %arg7[%c0_71, %c0_72] : memref<1x128xf32, #tpu.memory_space<vmem>>, vector<1x128xf32>
    %cst_73 = arith.constant dense<0.000000e+00> : vector<128xf32>
    %93 = vector.multi_reduction <add>, %90, %cst_73 [0] : vector<32x128xf32> to vector<128xf32>
    %94 = vector.shape_cast %93 : vector<128xf32> to vector<1x128xf32>
    %c8_i32_74 = arith.constant 8 : i32
    %95 = tpu.dynamic_rotate %94 by %c8_i32_74 dim 1 : vector<1x128xf32>, i32 -> vector<1x128xf32>
    %96 = arith.addf %94, %95 : vector<1x128xf32>
    %c16_i32_75 = arith.constant 16 : i32
    %97 = tpu.dynamic_rotate %96 by %c16_i32_75 dim 1 : vector<1x128xf32>, i32 -> vector<1x128xf32>
    %98 = arith.addf %96, %97 : vector<1x128xf32>
    %c32_i32_76 = arith.constant 32 : i32
    %99 = tpu.dynamic_rotate %98 by %c32_i32_76 dim 1 : vector<1x128xf32>, i32 -> vector<1x128xf32>
    %100 = arith.addf %98, %99 : vector<1x128xf32>
    %c64_i32_77 = arith.constant 64 : i32
    %101 = tpu.dynamic_rotate %100 by %c64_i32_77 dim 1 : vector<1x128xf32>, i32 -> vector<1x128xf32>
    %102 = arith.addf %100, %101 : vector<1x128xf32>
    %cst_78 = arith.constant 0.001953125 : f32
    %103 = vector.broadcast %cst_78 : f32 to vector<1x128xf32>
    %104 = arith.mulf %102, %103 : vector<1x128xf32>
    %105 = vector.broadcast %104 : vector<1x128xf32> to vector<32x128xf32>
    %106 = arith.subf %90, %105 : vector<32x128xf32>
    %107 = arith.mulf %106, %106 : vector<32x128xf32>
    %cst_79 = arith.constant dense<0.000000e+00> : vector<128xf32>
    %108 = vector.multi_reduction <add>, %107, %cst_79 [0] : vector<32x128xf32> to vector<128xf32>
    %109 = vector.shape_cast %108 : vector<128xf32> to vector<1x128xf32>
    %c8_i32_80 = arith.constant 8 : i32
    %110 = tpu.dynamic_rotate %109 by %c8_i32_80 dim 1 : vector<1x128xf32>, i32 -> vector<1x128xf32>
    %111 = arith.addf %109, %110 : vector<1x128xf32>
    %c16_i32_81 = arith.constant 16 : i32
    %112 = tpu.dynamic_rotate %111 by %c16_i32_81 dim 1 : vector<1x128xf32>, i32 -> vector<1x128xf32>
    %113 = arith.addf %111, %112 : vector<1x128xf32>
    %c32_i32_82 = arith.constant 32 : i32
    %114 = tpu.dynamic_rotate %113 by %c32_i32_82 dim 1 : vector<1x128xf32>, i32 -> vector<1x128xf32>
    %115 = arith.addf %113, %114 : vector<1x128xf32>
    %c64_i32_83 = arith.constant 64 : i32
    %116 = tpu.dynamic_rotate %115 by %c64_i32_83 dim 1 : vector<1x128xf32>, i32 -> vector<1x128xf32>
    %117 = arith.addf %115, %116 : vector<1x128xf32>
    %cst_84 = arith.constant 0.001953125 : f32
    %118 = vector.broadcast %cst_84 : f32 to vector<1x128xf32>
    %119 = arith.mulf %117, %118 : vector<1x128xf32>
    %cst_85 = arith.constant 9.99999974E-6 : f32
    %120 = vector.broadcast %cst_85 : f32 to vector<1x128xf32>
    %121 = arith.addf %119, %120 : vector<1x128xf32>
    %122 = math.rsqrt %121 : vector<1x128xf32>
    %123 = vector.broadcast %122 : vector<1x128xf32> to vector<32x128xf32>
    %124 = arith.mulf %106, %123 : vector<32x128xf32>
    %125 = vector.broadcast %91 : vector<1x128xf32> to vector<32x128xf32>
    %126 = arith.mulf %124, %125 : vector<32x128xf32>
    %127 = vector.broadcast %92 : vector<1x128xf32> to vector<32x128xf32>
    %128 = arith.addf %126, %127 : vector<32x128xf32>
    %c0_86 = arith.constant 0 : index
    %c0_87 = arith.constant 0 : index
    %c0_88 = arith.constant 0 : index
    %129 = vector.load %arg1[%c0_86, %c0_87, %c0_88] : memref<2x16x128xf32, #tpu.memory_space<vmem>>, vector<2x16x128xf32>
    %130 = vector.shape_cast %129 : vector<2x16x128xf32> to vector<32x128xf32>
    %cst_89 = arith.constant 5.000000e-01 : f32
    %131 = vector.broadcast %cst_89 : f32 to vector<32x128xf32>
    %132 = arith.mulf %131, %128 : vector<32x128xf32>
    %133 = arith.addf %130, %132 : vector<32x128xf32>
    %cst_90 = arith.constant 0.000000e+00 : f32
    %134 = vector.broadcast %cst_90 : f32 to vector<32x128xf32>
    %135 = arith.maximumf %133, %134 : vector<32x128xf32>
    %136 = vector.shape_cast %135 : vector<32x128xf32> to vector<2x16x128xf32>
    %c0_91 = arith.constant 0 : index
    %c0_92 = arith.constant 0 : index
    %c0_93 = arith.constant 0 : index
    %137 = vector.load %arg8[%c0_91, %c0_92, %c0_93] : memref<2x16x128xf32, #tpu.memory_space<vmem>>, vector<2x16x128xf32>
    tpu.vector_store %arg8[%c0_91, %c0_92, %c0_93], %136 {strides = array<i32>} : memref<2x16x128xf32, #tpu.memory_space<vmem>>, vector<2x16x128xf32>,
    return
  }
  func.func @transform_0(%arg0: i32) -> (i32, i32, i32) {
    %c0_i32 = arith.constant 0 : i32
    %c0_i32_0 = arith.constant 0 : i32
    %c0_i32_1 = arith.constant 0 : i32
    %c0_i32_2 = arith.constant 0 : i32
    return %c0_i32, %c0_i32_0, %c0_i32_1 : i32, i32, i32
  }
  func.func @transform_1(%arg0: i32) -> (i32, i32, i32) {
    %c0_i32 = arith.constant 0 : i32
    %c0_i32_0 = arith.constant 0 : i32
    %c0_i32_1 = arith.constant 0 : i32
    %c0_i32_2 = arith.constant 0 : i32
    return %c0_i32, %c0_i32_0, %c0_i32_1 : i32, i32, i32
  }
  func.func @transform_2(%arg0: i32) -> (i32, i32, i32) {
    %c0_i32 = arith.constant 0 : i32
    %c0_i32_0 = arith.constant 0 : i32
    %c0_i32_1 = arith.constant 0 : i32
    %c0_i32_2 = arith.constant 0 : i32
    return %c0_i32, %c0_i32_0, %c0_i32_1 : i32, i32, i32
  }
  func.func @transform_3(%arg0: i32) -> (i32, i32) {
    %c0_i32 = arith.constant 0 : i32
    %c0_i32_0 = arith.constant 0 : i32
    %c0_i32_1 = arith.constant 0 : i32
    return %c0_i32, %c0_i32_0 : i32, i32
  }
  func.func @transform_4(%arg0: i32) -> (i32, i32) {
    %c0_i32 = arith.constant 0 : i32
    %c0_i32_0 = arith.constant 0 : i32
    %c0_i32_1 = arith.constant 0 : i32
    return %c0_i32, %c0_i32_0 : i32, i32
  }
  func.func @transform_5(%arg0: i32) -> (i32, i32) {
    %c0_i32 = arith.constant 0 : i32
    %c0_i32_0 = arith.constant 0 : i32
    %c0_i32_1 = arith.constant 0 : i32
    return %c0_i32, %c0_i32_0 : i32, i32
  }
  func.func @transform_6(%arg0: i32) -> (i32, i32) {
    %c0_i32 = arith.constant 0 : i32
    %c0_i32_0 = arith.constant 0 : i32
    %c0_i32_1 = arith.constant 0 : i32
    return %c0_i32, %c0_i32_0 : i32, i32
  }
  func.func @transform_7(%arg0: i32) -> (i32, i32, i32) {
    %c0_i32 = arith.constant 0 : i32
    %c0_i32_0 = arith.constant 0 : i32
    %c0_i32_1 = arith.constant 0 : i32
    %c0_i32_2 = arith.constant 0 : i32
    return %c0_i32, %c0_i32_0, %c0_i32_1 : i32, i32, i32
  }
}

</mosaic_0001>

<llo_original>
// kernel: tpu_custom_call.1
$region0: #{tpu_custom_call.1}
  #allocation0 [shape = 'u32[]', space=smem, size = 0x4, offset = 0x4, fixed_abs, tag = 'smem constant byte address 0x4 - core index']
  #allocation1 [shape = 'u32[72,128]{1,0:T(1,128)}', space=vmem, size = 0x9000, scoped, tag = 'internal scratch']
  #allocation2 [shape = 'f32[2,18,128]{2,1,0:T(8,128)}', space=vmem, size = 0x6000, scoped, tag = 'scratch operand']
  %s0 = inlined_call_operand.hbm [shape: f32[2,16,128], index: 0, kind: input, shape index: {}]
  %s1 = inlined_call_operand.hbm [shape: bf16[3,128,128], index: 1, kind: input, shape index: {}]
  %s2 = inlined_call_operand.hbm [shape: bf16[3,128,128], index: 2, kind: input, shape index: {}]
  %s3 = inlined_call_operand.vmem [shape: f32[1,128], index: 3, kind: input, shape index: {}]
  %s4 = inlined_call_operand.vmem [shape: f32[1,128], index: 4, kind: input, shape index: {}]
  %s5 = inlined_call_operand.vmem [shape: f32[1,128], index: 5, kind: input, shape index: {}]
  %s6 = inlined_call_operand.vmem [shape: f32[1,128], index: 6, kind: input, shape index: {}]
  %s7 = inlined_call_operand.hbm [shape: f32[2,16,128], index: 7, kind: output, shape index: {}]
  %s8 = sld [smem:[#allocation0]]
  $region50: #{tpu_custom_call.1} parent=0
    _
  %s10 = ssub.s32 1, %s8
  %s11 = scalar_select 0, %s10, %s8
  $region1: #{tpu_custom_call.1} parent=0
    #allocation3 [shape = 'u8[16384]{0}', space=vmem, size = 0x4000, scoped, tag = 'input window, operand 0, single buffered']
    #allocation4 [shape = 's32[1]{0}', space=sflag, size = 0x4, scoped, tag = 'scoped memory for tpu_custom_call.1']
    #allocation5 [shape = 's32[1]{0}', space=sflag, size = 0x4, scoped, tag = 'scoped memory for tpu_custom_call.1']
    #allocation6 [shape = 'u8[98304]{0}', space=vmem, size = 0x18000, scoped, tag = 'input window, operand 1, single buffered']
    #allocation7 [shape = 's32[1]{0}', space=sflag, size = 0x4, scoped, tag = 'scoped memory for tpu_custom_call.1']
    #allocation8 [shape = 'u8[98304]{0}', space=vmem, size = 0x18000, scoped, tag = 'input window, operand 2, single buffered']
    #allocation9 [shape = 'u8[16384]{0}', space=vmem, size = 0x4000, scoped, tag = 'output window, operand 0, single buffered']
    %12 = vsyncpa [#allocation4], 0
    %13 = vsyncpa [#allocation7], 0
    %14 = vsyncpa [#allocation5], 0
    // Predicated region
    $region2: #{tpu_custom_call.1} parent=1 // pred_check
      _
    $region3: #{tpu_custom_call.1} parent=1 // pred_check_branch
      %16 = sbr.rel (0) target = $region5
    $region4: #{tpu_custom_call.1} parent=1 // pred_region
      %18 = vsyncadd [#allocation4], 0
      %s19 = sshll.u32 %s0, 4
      %s20 = int_to_ptr.hbm [resolvable:$true] %s19
      %s21 = sshll.u32 [#allocation3], 4
      %s22 = int_to_ptr.vmem [resolvable:$true] %s21
      %27 = dma.hbm_to_vmem [thread:$0]  %s20, 512, %s22, [#allocation4], 128, 128, 8
    $region5: #{tpu_custom_call.1} parent=1 // pred_fallthru
      _
    // Predicated region
    $region6: #{tpu_custom_call.1} parent=1 // pred_check
      _
    $region7: #{tpu_custom_call.1} parent=1 // pred_check_branch
      %29 = sbr.rel (0) target = $region9
    $region8: #{tpu_custom_call.1} parent=1 // pred_region
      %31 = vsyncadd [#allocation7], 0
      %s32 = sshll.u32 %s1, 4
      %s33 = int_to_ptr.hbm [resolvable:$true] %s32
      %s34 = sshll.u32 [#allocation6], 4
      %s35 = int_to_ptr.vmem [resolvable:$true] %s34
      %40 = dma.hbm_to_vmem [thread:$0]  %s33, 3072, %s35, [#allocation7], 64, 64, 4
    $region9: #{tpu_custom_call.1} parent=1 // pred_fallthru
      _
    // Predicated region
    $region10: #{tpu_custom_call.1} parent=1 // pred_check
      _
    $region11: #{tpu_custom_call.1} parent=1 // pred_check_branch
      %42 = sbr.rel (0) target = $region13
    $region12: #{tpu_custom_call.1} parent=1 // pred_region
      %44 = vsyncadd [#allocation7], 0
      %s45 = sshll.u32 %s2, 4
      %s46 = int_to_ptr.hbm [resolvable:$true] %s45
      %s47 = sshll.u32 [#allocation8], 4
      %s48 = int_to_ptr.vmem [resolvable:$true] %s47
      %53 = dma.hbm_to_vmem [thread:$0]  %s46, 3072, %s48, [#allocation7], 64, 64, 4
    $region13: #{tpu_custom_call.1} parent=1 // pred_fallthru
      _
    // Predicated region
    $region14: #{tpu_custom_call.1} parent=1 // pred_check
      _
    $region15: #{tpu_custom_call.1} parent=1 // pred_check_branch
      %55 = sbr.rel (0) target = $region17
    $region16: #{tpu_custom_call.1} parent=1 // pred_region
      _
    $region17: #{tpu_custom_call.1} parent=1 // pred_fallthru
      _
    // Predicated region
    $region18: #{tpu_custom_call.1} parent=1 // pred_check
      _
    $region19: #{tpu_custom_call.1} parent=1 // pred_check_branch
      %57 = sbr.rel (0) target = $region21
    $region20: #{tpu_custom_call.1} parent=1 // pred_region
      _
    $region21: #{tpu_custom_call.1} parent=1 // pred_fallthru
      _
    // Predicated region
    $region22: #{tpu_custom_call.1} parent=1 // pred_check
      _
    $region23: #{tpu_custom_call.1} parent=1 // pred_check_branch
      %59 = sbr.rel (0) target = $region25
    $region24: #{tpu_custom_call.1} parent=1 // pred_region
      _
    $region25: #{tpu_custom_call.1} parent=1 // pred_fallthru
      _
    // Predicated region
    $region26: #{tpu_custom_call.1} parent=1 // pred_check
      _
    $region27: #{tpu_custom_call.1} parent=1 // pred_check_branch
      %61 = sbr.rel (0) target = $region29
    $region28: #{tpu_custom_call.1} parent=1 // pred_region
      _
    $region29: #{tpu_custom_call.1} parent=1 // pred_fallthru
      _
    // Predicated region
    $region30: #{tpu_custom_call.1} parent=1 // pred_check
      _
    $region31: #{tpu_custom_call.1} parent=1 // pred_check_branch
      %63 = sbr.rel (0) target = $region33
    $region32: #{tpu_custom_call.1} parent=1 // pred_region
      %65 = dma.done [#allocation4], 512
    $region33: #{tpu_custom_call.1} parent=1 // pred_fallthru
      _
    // Predicated region
    $region34: #{tpu_custom_call.1} parent=1 // pred_check
      _
    $region35: #{tpu_custom_call.1} parent=1 // pred_check_branch
      %67 = sbr.rel (0) target = $region37
    $region36: #{tpu_custom_call.1} parent=1 // pred_region
      %69 = dma.done [#allocation7], 3072
    $region37: #{tpu_custom_call.1} parent=1 // pred_fallthru
      _
    // Predicated region
    $region38: #{tpu_custom_call.1} parent=1 // pred_check
      _
    $region39: #{tpu_custom_call.1} parent=1 // pred_check_branch
      %71 = sbr.rel (0) target = $region41
    $region40: #{tpu_custom_call.1} parent=1 // pred_region
      %73 = dma.done [#allocation7], 3072
    $region41: #{tpu_custom_call.1} parent=1 // pred_fallthru
      _
    %74 = vst [vmem:[#allocation2] sm:$0x1] 0.0
    %75 = vst [vmem:[#allocation2 + $0x18] sm:$0x1] 0.0
    %76 = vst [vmem:[#allocation2 + $0x11] sm:$0x1] 0.0
    %77 = vst [vmem:[#allocation2 + $0x29] sm:$0x1] 0.0
    %v78 = vld [vmem:[#allocation3] sm:$0xff]
    %v79 = vld [vmem:[#allocation3 + $0x8] sm:$0xff]
    %v80 = vld [vmem:[#allocation3 + $0x10] sm:$0xff]
    %v81 = vld [vmem:[#allocation3 + $0x18] sm:$0xff]
    %82 = vst [vmem:[#allocation2 + $0x1] sm:$0xff] %v78
    %83 = vst [vmem:[#allocation2 + $0x9] sm:$0xff] %v79
    %84 = vst [vmem:[#allocation2 + $0x19] sm:$0xff] %v80
    %85 = vst [vmem:[#allocation2 + $0x21] sm:$0xff] %v81
    %v86 = vld [vmem:[#allocation2] sm:$0xff]
    %v87 = vld [vmem:[#allocation2 + $0x8] sm:$0xff]
    %v88 = vld [vmem:[#allocation2 + $0x18] sm:$0xff]
    %v89 = vld [vmem:[#allocation2 + $0x20] sm:$0xff]
    %v90 = vpack.c.bf16 %v87, %v86
    %v91 = vpack.c.bf16 %v89, %v88
    %v92 = vld [vmem:[#allocation6] sm:$0xf]
    %v93 = vld [vmem:[#allocation6 + $0x4] sm:$0xf]
    %v94 = vld [vmem:[#allocation6 + $0x8] sm:$0xf]
    %v95 = vld [vmem:[#allocation6 + $0xc] sm:$0xf]
    %v96 = vld [vmem:[#allocation6 + $0x10] sm:$0xf]
    %v97 = vld [vmem:[#allocation6 + $0x14] sm:$0xf]
    %v98 = vld [vmem:[#allocation6 + $0x18] sm:$0xf]
    %v99 = vld [vmem:[#allocation6 + $0x1c] sm:$0xf]
    %v100 = vld [vmem:[#allocation6 + $0x20] sm:$0xf]
    %v101 = vld [vmem:[#allocation6 + $0x24] sm:$0xf]
    %v102 = vld [vmem:[#allocation6 + $0x28] sm:$0xf]
    %v103 = vld [vmem:[#allocation6 + $0x2c] sm:$0xf]
    %v104 = vld [vmem:[#allocation6 + $0x30] sm:$0xf]
    %v105 = vld [vmem:[#allocation6 + $0x34] sm:$0xf]
    %v106 = vld [vmem:[#allocation6 + $0x38] sm:$0xf]
    %v107 = vld [vmem:[#allocation6 + $0x3c] sm:$0xf]
    %v108 = vld [vmem:[#allocation2 + $0x1] sm:$0xff]
    %v109 = vld [vmem:[#allocation2 + $0x9] sm:$0xff]
    %v110 = vld [vmem:[#allocation2 + $0x19] sm:$0xff]
    %v111 = vld [vmem:[#allocation2 + $0x21] sm:$0xff]
    %v112 = vpack.c.bf16 %v109, %v108
    %v113 = vpack.c.bf16 %v111, %v110
    %s114 = scalar_lea.vmem [#allocation6], 64
    %v115 = vld [vmem:[%s114] sm:$0xf]
    %v116 = vld [vmem:[%s114 + $0x4] sm:$0xf]
    %v117 = vld [vmem:[%s114 + $0x8] sm:$0xf]
    %v118 = vld [vmem:[%s114 + $0xc] sm:$0xf]
    %v119 = vld [vmem:[%s114 + $0x10] sm:$0xf]
    %v120 = vld [vmem:[%s114 + $0x14] sm:$0xf]
    %v121 = vld [vmem:[%s114 + $0x18] sm:$0xf]
    %v122 = vld [vmem:[%s114 + $0x1c] sm:$0xf]
    %v123 = vld [vmem:[%s114 + $0x20] sm:$0xf]
    %v124 = vld [vmem:[%s114 + $0x24] sm:$0xf]
    %v125 = vld [vmem:[%s114 + $0x28] sm:$0xf]
    %v126 = vld [vmem:[%s114 + $0x2c] sm:$0xf]
    %v127 = vld [vmem:[%s114 + $0x30] sm:$0xf]
    %v128 = vld [vmem:[%s114 + $0x34] sm:$0xf]
    %v129 = vld [vmem:[%s114 + $0x38] sm:$0xf]
    %v130 = vld [vmem:[%s114 + $0x3c] sm:$0xf]
    %v147 = vunpack.c.l.b16 %v115
    %v148 = vunpack.c.l.b16 %v116
    %v149 = vunpack.c.l.b16 %v117
    %v150 = vunpack.c.l.b16 %v118
    %v151 = vunpack.c.l.b16 %v119
    %v152 = vunpack.c.l.b16 %v120
    %v153 = vunpack.c.l.b16 %v121
    %v154 = vunpack.c.l.b16 %v122
    %v155 = vunpack.c.l.b16 %v123
    %v156 = vunpack.c.l.b16 %v124
    %v157 = vunpack.c.l.b16 %v125
    %v158 = vunpack.c.l.b16 %v126
    %v159 = vunpack.c.l.b16 %v127
    %v160 = vunpack.c.l.b16 %v128
    %v161 = vunpack.c.l.b16 %v129
    %v162 = vunpack.c.l.b16 %v130
    %v163 = vpack.c.b16 %v148, %v147
    %v164 = vpack.c.b16 %v150, %v149
    %v165 = vpack.c.b16 %v152, %v151
    %v166 = vpack.c.b16 %v154, %v153
    %v167 = vpack.c.b16 %v156, %v155
    %v168 = vpack.c.b16 %v158, %v157
    %v169 = vpack.c.b16 %v160, %v159
    %v170 = vpack.c.b16 %v162, %v161
    %179 = vmatpush.bf16.msra.mxu0 %v170
    %180 = vmatpush.bf16.msra.mxu0 %v169
    %181 = vmatpush.bf16.msra.mxu0 %v168
    %182 = vmatpush.bf16.msra.mxu0 %v167
    %183 = vmatpush.bf16.msra.mxu0 %v166
    %184 = vmatpush.bf16.msra.mxu0 %v165
    %185 = vmatpush.bf16.msra.mxu0 %v164
    %186 = vmatpush.bf16.msra.mxu0 %v163
    %187 = vmatmul.bf16.gmra.mxu0 %v112
    %v188 = vpop.f32.mrf.mxu0
    %v189 = vadd.f32 0.0, %v188
    %v190 = vpop.f32.mrf.mxu0
    %v191 = vadd.f32 0.0, %v190
    %192 = vmatmul.bf16.gmra.mxu0 %v113
    %v193 = vpop.f32.mrf.mxu0
    %v194 = vadd.f32 0.0, %v193
    %v195 = vpop.f32.mrf.mxu0
    %v196 = vadd.f32 0.0, %v195
    %197 = vdwg.mxu0
    %v214 = vunpack.c.l.b16 %v92
    %v215 = vunpack.c.l.b16 %v93
    %v216 = vunpack.c.l.b16 %v94
    %v217 = vunpack.c.l.b16 %v95
    %v218 = vunpack.c.l.b16 %v96
    %v219 = vunpack.c.l.b16 %v97
    %v220 = vunpack.c.l.b16 %v98
    %v221 = vunpack.c.l.b16 %v99
    %v222 = vunpack.c.l.b16 %v100
    %v223 = vunpack.c.l.b16 %v101
    %v224 = vunpack.c.l.b16 %v102
    %v225 = vunpack.c.l.b16 %v103
    %v226 = vunpack.c.l.b16 %v104
    %v227 = vunpack.c.l.b16 %v105
    %v228 = vunpack.c.l.b16 %v106
    %v229 = vunpack.c.l.b16 %v107
    %v230 = vpack.c.b16 %v215, %v214
    %v231 = vpack.c.b16 %v217, %v216
    %v232 = vpack.c.b16 %v219, %v218
    %v233 = vpack.c.b16 %v221, %v220
    %v234 = vpack.c.b16 %v223, %v222
    %v235 = vpack.c.b16 %v225, %v224
    %v236 = vpack.c.b16 %v227, %v226
    %v237 = vpack.c.b16 %v229, %v228
    %246 = vmatpush.bf16.msra.mxu0 %v237
    %247 = vmatpush.bf16.msra.mxu0 %v236
    %248 = vmatpush.bf16.msra.mxu0 %v235
    %249 = vmatpush.bf16.msra.mxu0 %v234
    %250 = vmatpush.bf16.msra.mxu0 %v233
    %251 = vmatpush.bf16.msra.mxu0 %v232
    %252 = vmatpush.bf16.msra.mxu0 %v231
    %253 = vmatpush.bf16.msra.mxu0 %v230
    %254 = vmatmul.bf16.gmra.mxu0 %v90
    %v255 = vpop.f32.mrf.mxu0
    %v256 = vadd.f32 %v189, %v255
    %v257 = vpop.f32.mrf.mxu0
    %v258 = vadd.f32 %v191, %v257
    %259 = vmatmul.bf16.gmra.mxu0 %v91
    %v260 = vpop.f32.mrf.mxu0
    %v261 = vadd.f32 %v194, %v260
    %v262 = vpop.f32.mrf.mxu0
    %v263 = vadd.f32 %v196, %v262
    %264 = vdwg.mxu0
    %v265 = vld [vmem:[#allocation2 + $0x2] sm:$0xff]
    %v266 = vld [vmem:[#allocation2 + $0xa] sm:$0xff]
    %v267 = vld [vmem:[#allocation2 + $0x1a] sm:$0xff]
    %v268 = vld [vmem:[#allocation2 + $0x22] sm:$0xff]
    %v269 = vpack.c.bf16 %v266, %v265
    %v270 = vpack.c.bf16 %v268, %v267
    %s271 = scalar_lea.vmem [#allocation6], 128
    %v272 = vld [vmem:[%s271] sm:$0xf]
    %v273 = vld [vmem:[%s271 + $0x4] sm:$0xf]
    %v274 = vld [vmem:[%s271 + $0x8] sm:$0xf]
    %v275 = vld [vmem:[%s271 + $0xc] sm:$0xf]
    %v276 = vld [vmem:[%s271 + $0x10] sm:$0xf]
    %v277 = vld [vmem:[%s271 + $0x14] sm:$0xf]
    %v278 = vld [vmem:[%s271 + $0x18] sm:$0xf]
    %v279 = vld [vmem:[%s271 + $0x1c] sm:$0xf]
    %v280 = vld [vmem:[%s271 + $0x20] sm:$0xf]
    %v281 = vld [vmem:[%s271 + $0x24] sm:$0xf]
    %v282 = vld [vmem:[%s271 + $0x28] sm:$0xf]
    %v283 = vld [vmem:[%s271 + $0x2c] sm:$0xf]
    %v284 = vld [vmem:[%s271 + $0x30] sm:$0xf]
    %v285 = vld [vmem:[%s271 + $0x34] sm:$0xf]
    %v286 = vld [vmem:[%s271 + $0x38] sm:$0xf]
    %v287 = vld [vmem:[%s271 + $0x3c] sm:$0xf]
    %v304 = vunpack.c.l.b16 %v272
    %v305 = vunpack.c.l.b16 %v273
    %v306 = vunpack.c.l.b16 %v274
    %v307 = vunpack.c.l.b16 %v275
    %v308 = vunpack.c.l.b16 %v276
    %v309 = vunpack.c.l.b16 %v277
    %v310 = vunpack.c.l.b16 %v278
    %v311 = vunpack.c.l.b16 %v279
    %v312 = vunpack.c.l.b16 %v280
    %v313 = vunpack.c.l.b16 %v281
    %v314 = vunpack.c.l.b16 %v282
    %v315 = vunpack.c.l.b16 %v283
    %v316 = vunpack.c.l.b16 %v284
    %v317 = vunpack.c.l.b16 %v285
    %v318 = vunpack.c.l.b16 %v286
    %v319 = vunpack.c.l.b16 %v287
    %v320 = vpack.c.b16 %v305, %v304
    %v321 = vpack.c.b16 %v307, %v306
    %v322 = vpack.c.b16 %v309, %v308
    %v323 = vpack.c.b16 %v311, %v310
    %v324 = vpack.c.b16 %v313, %v312
    %v325 = vpack.c.b16 %v315, %v314
    %v326 = vpack.c.b16 %v317, %v316
    %v327 = vpack.c.b16 %v319, %v318
    %336 = vmatpush.bf16.msra.mxu0 %v327
    %337 = vmatpush.bf16.msra.mxu0 %v326
    %338 = vmatpush.bf16.msra.mxu0 %v325
    %339 = vmatpush.bf16.msra.mxu0 %v324
    %340 = vmatpush.bf16.msra.mxu0 %v323
    %341 = vmatpush.bf16.msra.mxu0 %v322
    %342 = vmatpush.bf16.msra.mxu0 %v321
    %343 = vmatpush.bf16.msra.mxu0 %v320
    %344 = vmatmul.bf16.gmra.mxu0 %v269
    %v345 = vpop.f32.mrf.mxu0
    %v346 = vadd.f32 0.0, %v345
    %v347 = vpop.f32.mrf.mxu0
    %v348 = vadd.f32 0.0, %v347
    %349 = vmatmul.bf16.gmra.mxu0 %v270
    %v350 = vpop.f32.mrf.mxu0
    %v351 = vadd.f32 0.0, %v350
    %v352 = vpop.f32.mrf.mxu0
    %v353 = vadd.f32 0.0, %v352
    %354 = vdwg.mxu0
    %v355 = vadd.f32 %v256, %v346
    %v356 = vadd.f32 %v258, %v348
    %v357 = vadd.f32 %v261, %v351
    %v358 = vadd.f32 %v263, %v353
    %v359 = vld [vmem:[%s3] sm:$0x1]
    %v360 = vld [vmem:[%s4] sm:$0x1]
    %v361 = vadd.f32 %v355, %v356
    %v362 = vadd.f32 %v361, %v357
    %v363 = vadd.f32 %v362, %v358
    %v364 = vrot.slane %v363, 4
    %v365 = vadd.f32 %v363, %v364
    %v366 = vrot.slane %v365, 2
    %v367 = vadd.f32 %v365, %v366
    %v368 = vrot.slane %v367, 1
    %v369 = vadd.f32 %v367, %v368
    %370 = vrot.lane.b32.xlu0 %v369, 8
    %v371 = vpop.permute.xlu0 %370
    %v372 = vadd.f32 %v369, %v371
    %373 = vrot.lane.b32.xlu0 %v372, 16
    %v374 = vpop.permute.xlu0 %373
    %v375 = vadd.f32 %v372, %v374
    %376 = vrot.lane.b32.xlu0 %v375, 32
    %v377 = vpop.permute.xlu0 %376
    %v378 = vadd.f32 %v375, %v377
    %379 = vrot.lane.b32.xlu0 %v378, 64
    %v380 = vpop.permute.xlu0 %379
    %v381 = vadd.f32 %v378, %v380
    %v382 = vmul.f32 %v381, 0.001953125
    %v383 = vperm.slane %v382, 0
    %v384 = vsub.f32 %v355, %v383
    %v385 = vsub.f32 %v356, %v383
    %v386 = vsub.f32 %v357, %v383
    %v387 = vsub.f32 %v358, %v383
    %v388 = vmul.f32 %v384, %v384
    %v389 = vmul.f32 %v385, %v385
    %v390 = vmul.f32 %v386, %v386
    %v391 = vmul.f32 %v387, %v387
    %v392 = vadd.f32 %v388, %v389
    %v393 = vadd.f32 %v392, %v390
    %v394 = vadd.f32 %v393, %v391
    %v395 = vrot.slane %v394, 4
    %v396 = vadd.f32 %v394, %v395
    %v397 = vrot.slane %v396, 2
    %v398 = vadd.f32 %v396, %v397
    %v399 = vrot.slane %v398, 1
    %v400 = vadd.f32 %v398, %v399
    %401 = vrot.lane.b32.xlu0 %v400, 8
    %v402 = vpop.permute.xlu0 %401
    %v403 = vadd.f32 %v400, %v402
    %404 = vrot.lane.b32.xlu0 %v403, 16
    %v405 = vpop.permute.xlu0 %404
    %v406 = vadd.f32 %v403, %v405
    %407 = vrot.lane.b32.xlu0 %v406, 32
    %v408 = vpop.permute.xlu0 %407
    %v409 = vadd.f32 %v406, %v408
    %410 = vrot.lane.b32.xlu0 %v409, 64
    %v411 = vpop.permute.xlu0 %410
    %v412 = vadd.f32 %v409, %v411
    %v413 = vmul.f32 %v412, 0.001953125
    %v414 = vadd.f32 %v413, 1e-05
    %v415 = vrsqrt.pop %v414
    %v416 = vmul.f32 %v415, %v414
    %v417 = vmul.f32 %v416, %v415
    %v418 = vmul.f32 0.5, %v417
    %v419 = vsub.f32 1.5, %v418
    %v420 = vmul.f32 %v415, %v419
    %vm421 = vweird.f32 %v414
    %vm422 = vweird.f32 %v415
    %vm423 = vmor %vm421, %vm422
    %v424 = vsel %vm423, %v415, %v420
    %v425 = vperm.slane %v424, 0
    %v426 = vmul.f32 %v384, %v425
    %v427 = vmul.f32 %v385, %v425
    %v428 = vmul.f32 %v386, %v425
    %v429 = vmul.f32 %v387, %v425
    %v431 = vperm.slane %v359, 0
    %v433 = vmul.f32 %v426, %v431
    %v434 = vmul.f32 %v427, %v431
    %v435 = vmul.f32 %v428, %v431
    %v436 = vmul.f32 %v429, %v431
    %v438 = vperm.slane %v360, 0
    %v440 = vadd.f32 %v433, %v438
    %v441 = vadd.f32 %v434, %v438
    %v442 = vadd.f32 %v435, %v438
    %v443 = vadd.f32 %v436, %v438
    %v444 = vmax.f32 %v440, 0.0
    %v445 = vmax.f32 %v441, 0.0
    %v446 = vmax.f32 %v442, 0.0
    %v447 = vmax.f32 %v443, 0.0
    %448 = vst [vmem:[#allocation2 + $0x1] sm:$0xff] %v444
    %449 = vst [vmem:[#allocation2 + $0x9] sm:$0xff] %v445
    %450 = vst [vmem:[#allocation2 + $0x19] sm:$0xff] %v446
    %451 = vst [vmem:[#allocation2 + $0x21] sm:$0xff] %v447
    %v452 = vld [vmem:[#allocation2] sm:$0xff]
    %v453 = vld [vmem:[#allocation2 + $0x8] sm:$0xff]
    %v454 = vld [vmem:[#allocation2 + $0x18] sm:$0xff]
    %v455 = vld [vmem:[#allocation2 + $0x20] sm:$0xff]
    %v456 = vpack.c.bf16 %v453, %v452
    %v457 = vpack.c.bf16 %v455, %v454
    %v458 = vld [vmem:[#allocation8] sm:$0xf]
    %v459 = vld [vmem:[#allocation8 + $0x4] sm:$0xf]
    %v460 = vld [vmem:[#allocation8 + $0x8] sm:$0xf]
    %v461 = vld [vmem:[#allocation8 + $0xc] sm:$0xf]
    %v462 = vld [vmem:[#allocation8 + $0x10] sm:$0xf]
    %v463 = vld [vmem:[#allocation8 + $0x14] sm:$0xf]
    %v464 = vld [vmem:[#allocation8 + $0x18] sm:$0xf]
    %v465 = vld [vmem:[#allocation8 + $0x1c] sm:$0xf]
    %v466 = vld [vmem:[#allocation8 + $0x20] sm:$0xf]
    %v467 = vld [vmem:[#allocation8 + $0x24] sm:$0xf]
    %v468 = vld [vmem:[#allocation8 + $0x28] sm:$0xf]
    %v469 = vld [vmem:[#allocation8 + $0x2c] sm:$0xf]
    %v470 = vld [vmem:[#allocation8 + $0x30] sm:$0xf]
    %v471 = vld [vmem:[#allocation8 + $0x34] sm:$0xf]
    %v472 = vld [vmem:[#allocation8 + $0x38] sm:$0xf]
    %v473 = vld [vmem:[#allocation8 + $0x3c] sm:$0xf]
    %v474 = vld [vmem:[#allocation2 + $0x1] sm:$0xff]
    %v475 = vld [vmem:[#allocation2 + $0x9] sm:$0xff]
    %v476 = vld [vmem:[#allocation2 + $0x19] sm:$0xff]
    %v477 = vld [vmem:[#allocation2 + $0x21] sm:$0xff]
    %v478 = vpack.c.bf16 %v475, %v474
    %v479 = vpack.c.bf16 %v477, %v476
    %s480 = scalar_lea.vmem [#allocation8], 64
    %v481 = vld [vmem:[%s480] sm:$0xf]
    %v482 = vld [vmem:[%s480 + $0x4] sm:$0xf]
    %v483 = vld [vmem:[%s480 + $0x8] sm:$0xf]
    %v484 = vld [vmem:[%s480 + $0xc] sm:$0xf]
    %v485 = vld [vmem:[%s480 + $0x10] sm:$0xf]
    %v486 = vld [vmem:[%s480 + $0x14] sm:$0xf]
    %v487 = vld [vmem:[%s480 + $0x18] sm:$0xf]
    %v488 = vld [vmem:[%s480 + $0x1c] sm:$0xf]
    %v489 = vld [vmem:[%s480 + $0x20] sm:$0xf]
    %v490 = vld [vmem:[%s480 + $0x24] sm:$0xf]
    %v491 = vld [vmem:[%s480 + $0x28] sm:$0xf]
    %v492 = vld [vmem:[%s480 + $0x2c] sm:$0xf]
    %v493 = vld [vmem:[%s480 + $0x30] sm:$0xf]
    %v494 = vld [vmem:[%s480 + $0x34] sm:$0xf]
    %v495 = vld [vmem:[%s480 + $0x38] sm:$0xf]
    %v496 = vld [vmem:[%s480 + $0x3c] sm:$0xf]
    %v513 = vunpack.c.l.b16 %v481
    %v514 = vunpack.c.l.b16 %v482
    %v515 = vunpack.c.l.b16 %v483
    %v516 = vunpack.c.l.b16 %v484
    %v517 = vunpack.c.l.b16 %v485
    %v518 = vunpack.c.l.b16 %v486
    %v519 = vunpack.c.l.b16 %v487
    %v520 = vunpack.c.l.b16 %v488
    %v521 = vunpack.c.l.b16 %v489
    %v522 = vunpack.c.l.b16 %v490
    %v523 = vunpack.c.l.b16 %v491
    %v524 = vunpack.c.l.b16 %v492
    %v525 = vunpack.c.l.b16 %v493
    %v526 = vunpack.c.l.b16 %v494
    %v527 = vunpack.c.l.b16 %v495
    %v528 = vunpack.c.l.b16 %v496
    %v529 = vpack.c.b16 %v514, %v513
    %v530 = vpack.c.b16 %v516, %v515
    %v531 = vpack.c.b16 %v518, %v517
    %v532 = vpack.c.b16 %v520, %v519
    %v533 = vpack.c.b16 %v522, %v521
    %v534 = vpack.c.b16 %v524, %v523
    %v535 = vpack.c.b16 %v526, %v525
    %v536 = vpack.c.b16 %v528, %v527
    %545 = vmatpush.bf16.msra.mxu0 %v536
    %546 = vmatpush.bf16.msra.mxu0 %v535
    %547 = vmatpush.bf16.msra.mxu0 %v534
    %548 = vmatpush.bf16.msra.mxu0 %v533
    %549 = vmatpush.bf16.msra.mxu0 %v532
    %550 = vmatpush.bf16.msra.mxu0 %v531
    %551 = vmatpush.bf16.msra.mxu0 %v530
    %552 = vmatpush.bf16.msra.mxu0 %v529
    %553 = vmatmul.bf16.gmra.mxu0 %v478
    %v554 = vpop.f32.mrf.mxu0
    %v555 = vadd.f32 0.0, %v554
    %v556 = vpop.f32.mrf.mxu0
    %v557 = vadd.f32 0.0, %v556
    %558 = vmatmul.bf16.gmra.mxu0 %v479
    %v559 = vpop.f32.mrf.mxu0
    %v560 = vadd.f32 0.0, %v559
    %v561 = vpop.f32.mrf.mxu0
    %v562 = vadd.f32 0.0, %v561
    %563 = vdwg.mxu0
    %v580 = vunpack.c.l.b16 %v458
    %v581 = vunpack.c.l.b16 %v459
    %v582 = vunpack.c.l.b16 %v460
    %v583 = vunpack.c.l.b16 %v461
    %v584 = vunpack.c.l.b16 %v462
    %v585 = vunpack.c.l.b16 %v463
    %v586 = vunpack.c.l.b16 %v464
    %v587 = vunpack.c.l.b16 %v465
    %v588 = vunpack.c.l.b16 %v466
    %v589 = vunpack.c.l.b16 %v467
    %v590 = vunpack.c.l.b16 %v468
    %v591 = vunpack.c.l.b16 %v469
    %v592 = vunpack.c.l.b16 %v470
    %v593 = vunpack.c.l.b16 %v471
    %v594 = vunpack.c.l.b16 %v472
    %v595 = vunpack.c.l.b16 %v473
    %v596 = vpack.c.b16 %v581, %v580
    %v597 = vpack.c.b16 %v583, %v582
    %v598 = vpack.c.b16 %v585, %v584
    %v599 = vpack.c.b16 %v587, %v586
    %v600 = vpack.c.b16 %v589, %v588
    %v601 = vpack.c.b16 %v591, %v590
    %v602 = vpack.c.b16 %v593, %v592
    %v603 = vpack.c.b16 %v595, %v594
    %612 = vmatpush.bf16.msra.mxu0 %v603
    %613 = vmatpush.bf16.msra.mxu0 %v602
    %614 = vmatpush.bf16.msra.mxu0 %v601
    %615 = vmatpush.bf16.msra.mxu0 %v600
    %616 = vmatpush.bf16.msra.mxu0 %v599
    %617 = vmatpush.bf16.msra.mxu0 %v598
    %618 = vmatpush.bf16.msra.mxu0 %v597
    %619 = vmatpush.bf16.msra.mxu0 %v596
    %620 = vmatmul.bf16.gmra.mxu0 %v456
    %v621 = vpop.f32.mrf.mxu0
    %v622 = vadd.f32 %v555, %v621
    %v623 = vpop.f32.mrf.mxu0
    %v624 = vadd.f32 %v557, %v623
    %625 = vmatmul.bf16.gmra.mxu0 %v457
    %v626 = vpop.f32.mrf.mxu0
    %v627 = vadd.f32 %v560, %v626
    %v628 = vpop.f32.mrf.mxu0
    %v629 = vadd.f32 %v562, %v628
    %630 = vdwg.mxu0
    %v631 = vld [vmem:[#allocation2 + $0x2] sm:$0xff]
    %v632 = vld [vmem:[#allocation2 + $0xa] sm:$0xff]
    %v633 = vld [vmem:[#allocation2 + $0x1a] sm:$0xff]
    %v634 = vld [vmem:[#allocation2 + $0x22] sm:$0xff]
    %v635 = vpack.c.bf16 %v632, %v631
    %v636 = vpack.c.bf16 %v634, %v633
    %s637 = scalar_lea.vmem [#allocation8], 128
    %v638 = vld [vmem:[%s637] sm:$0xf]
    %v639 = vld [vmem:[%s637 + $0x4] sm:$0xf]
    %v640 = vld [vmem:[%s637 + $0x8] sm:$0xf]
    %v641 = vld [vmem:[%s637 + $0xc] sm:$0xf]
    %v642 = vld [vmem:[%s637 + $0x10] sm:$0xf]
    %v643 = vld [vmem:[%s637 + $0x14] sm:$0xf]
    %v644 = vld [vmem:[%s637 + $0x18] sm:$0xf]
    %v645 = vld [vmem:[%s637 + $0x1c] sm:$0xf]
    %v646 = vld [vmem:[%s637 + $0x20] sm:$0xf]
    %v647 = vld [vmem:[%s637 + $0x24] sm:$0xf]
    %v648 = vld [vmem:[%s637 + $0x28] sm:$0xf]
    %v649 = vld [vmem:[%s637 + $0x2c] sm:$0xf]
    %v650 = vld [vmem:[%s637 + $0x30] sm:$0xf]
    %v651 = vld [vmem:[%s637 + $0x34] sm:$0xf]
    %v652 = vld [vmem:[%s637 + $0x38] sm:$0xf]
    %v653 = vld [vmem:[%s637 + $0x3c] sm:$0xf]
    %v670 = vunpack.c.l.b16 %v638
    %v671 = vunpack.c.l.b16 %v639
    %v672 = vunpack.c.l.b16 %v640
    %v673 = vunpack.c.l.b16 %v641
    %v674 = vunpack.c.l.b16 %v642
    %v675 = vunpack.c.l.b16 %v643
    %v676 = vunpack.c.l.b16 %v644
    %v677 = vunpack.c.l.b16 %v645
    %v678 = vunpack.c.l.b16 %v646
    %v679 = vunpack.c.l.b16 %v647
    %v680 = vunpack.c.l.b16 %v648
    %v681 = vunpack.c.l.b16 %v649
    %v682 = vunpack.c.l.b16 %v650
    %v683 = vunpack.c.l.b16 %v651
    %v684 = vunpack.c.l.b16 %v652
    %v685 = vunpack.c.l.b16 %v653
    %v686 = vpack.c.b16 %v671, %v670
    %v687 = vpack.c.b16 %v673, %v672
    %v688 = vpack.c.b16 %v675, %v674
    %v689 = vpack.c.b16 %v677, %v676
    %v690 = vpack.c.b16 %v679, %v678
    %v691 = vpack.c.b16 %v681, %v680
    %v692 = vpack.c.b16 %v683, %v682
    %v693 = vpack.c.b16 %v685, %v684
    %702 = vmatpush.bf16.msra.mxu0 %v693
    %703 = vmatpush.bf16.msra.mxu0 %v692
    %704 = vmatpush.bf16.msra.mxu0 %v691
    %705 = vmatpush.bf16.msra.mxu0 %v690
    %706 = vmatpush.bf16.msra.mxu0 %v689
    %707 = vmatpush.bf16.msra.mxu0 %v688
    %708 = vmatpush.bf16.msra.mxu0 %v687
    %709 = vmatpush.bf16.msra.mxu0 %v686
    %710 = vmatmul.bf16.gmra.mxu0 %v635
    %v711 = vpop.f32.mrf.mxu0
    %v712 = vadd.f32 0.0, %v711
    %v713 = vpop.f32.mrf.mxu0
    %v714 = vadd.f32 0.0, %v713
    %715 = vmatmul.bf16.gmra.mxu0 %v636
    %v716 = vpop.f32.mrf.mxu0
    %v717 = vadd.f32 0.0, %v716
    %v718 = vpop.f32.mrf.mxu0
    %v719 = vadd.f32 0.0, %v718
    %720 = vdwg.mxu0
    %v721 = vadd.f32 %v622, %v712
    %v722 = vadd.f32 %v624, %v714
    %v723 = vadd.f32 %v627, %v717
    %v724 = vadd.f32 %v629, %v719
    %v725 = vld [vmem:[%s5] sm:$0x1]
    %v726 = vld [vmem:[%s6] sm:$0x1]
    %v727 = vadd.f32 %v721, %v722
    %v728 = vadd.f32 %v727, %v723
    %v729 = vadd.f32 %v728, %v724
    %v730 = vrot.slane %v729, 4
    %v731 = vadd.f32 %v729, %v730
    %v732 = vrot.slane %v731, 2
    %v733 = vadd.f32 %v731, %v732
    %v734 = vrot.slane %v733, 1
    %v735 = vadd.f32 %v733, %v734
    %736 = vrot.lane.b32.xlu0 %v735, 8
    %v737 = vpop.permute.xlu0 %736
    %v738 = vadd.f32 %v735, %v737
    %739 = vrot.lane.b32.xlu0 %v738, 16
    %v740 = vpop.permute.xlu0 %739
    %v741 = vadd.f32 %v738, %v740
    %742 = vrot.lane.b32.xlu0 %v741, 32
    %v743 = vpop.permute.xlu0 %742
    %v744 = vadd.f32 %v741, %v743
    %745 = vrot.lane.b32.xlu0 %v744, 64
    %v746 = vpop.permute.xlu0 %745
    %v747 = vadd.f32 %v744, %v746
    %v748 = vmul.f32 %v747, 0.001953125
    %v749 = vperm.slane %v748, 0
    %v750 = vsub.f32 %v721, %v749
    %v751 = vsub.f32 %v722, %v749
    %v752 = vsub.f32 %v723, %v749
    %v753 = vsub.f32 %v724, %v749
    %v754 = vmul.f32 %v750, %v750
    %v755 = vmul.f32 %v751, %v751
    %v756 = vmul.f32 %v752, %v752
    %v757 = vmul.f32 %v753, %v753
    %v758 = vadd.f32 %v754, %v755
    %v759 = vadd.f32 %v758, %v756
    %v760 = vadd.f32 %v759, %v757
    %v761 = vrot.slane %v760, 4
    %v762 = vadd.f32 %v760, %v761
    %v763 = vrot.slane %v762, 2
    %v764 = vadd.f32 %v762, %v763
    %v765 = vrot.slane %v764, 1
    %v766 = vadd.f32 %v764, %v765
    %767 = vrot.lane.b32.xlu0 %v766, 8
    %v768 = vpop.permute.xlu0 %767
    %v769 = vadd.f32 %v766, %v768
    %770 = vrot.lane.b32.xlu0 %v769, 16
    %v771 = vpop.permute.xlu0 %770
    %v772 = vadd.f32 %v769, %v771
    %773 = vrot.lane.b32.xlu0 %v772, 32
    %v774 = vpop.permute.xlu0 %773
    %v775 = vadd.f32 %v772, %v774
    %776 = vrot.lane.b32.xlu0 %v775, 64
    %v777 = vpop.permute.xlu0 %776
    %v778 = vadd.f32 %v775, %v777
    %v779 = vmul.f32 %v778, 0.001953125
    %v780 = vadd.f32 %v779, 1e-05
    %v781 = vrsqrt.pop %v780
    %v782 = vmul.f32 %v781, %v780
    %v783 = vmul.f32 %v782, %v781
    %v784 = vmul.f32 0.5, %v783
    %v785 = vsub.f32 1.5, %v784
    %v786 = vmul.f32 %v781, %v785
    %vm787 = vweird.f32 %v780
    %vm788 = vweird.f32 %v781
    %vm789 = vmor %vm787, %vm788
    %v790 = vsel %vm789, %v781, %v786
    %v791 = vperm.slane %v790, 0
    %v792 = vmul.f32 %v750, %v791
    %v793 = vmul.f32 %v751, %v791
    %v794 = vmul.f32 %v752, %v791
    %v795 = vmul.f32 %v753, %v791
    %v797 = vperm.slane %v725, 0
    %v799 = vmul.f32 %v792, %v797
    %v800 = vmul.f32 %v793, %v797
    %v801 = vmul.f32 %v794, %v797
    %v802 = vmul.f32 %v795, %v797
    %v804 = vperm.slane %v726, 0
    %v806 = vadd.f32 %v799, %v804
    %v807 = vadd.f32 %v800, %v804
    %v808 = vadd.f32 %v801, %v804
    %v809 = vadd.f32 %v802, %v804
    %v810 = vld [vmem:[#allocation3] sm:$0xff]
    %v811 = vld [vmem:[#allocation3 + $0x8] sm:$0xff]
    %v812 = vld [vmem:[#allocation3 + $0x10] sm:$0xff]
    %v813 = vld [vmem:[#allocation3 + $0x18] sm:$0xff]
    %v814 = vmul.f32 %v806, 0.5
    %v815 = vmul.f32 %v807, 0.5
    %v816 = vmul.f32 %v808, 0.5
    %v817 = vmul.f32 %v809, 0.5
    %v818 = vadd.f32 %v810, %v814
    %v819 = vadd.f32 %v811, %v815
    %v820 = vadd.f32 %v812, %v816
    %v821 = vadd.f32 %v813, %v817
    %v822 = vmax.f32 %v818, 0.0
    %v823 = vmax.f32 %v819, 0.0
    %v824 = vmax.f32 %v820, 0.0
    %v825 = vmax.f32 %v821, 0.0
    %826 = vst [vmem:[#allocation9] sm:$0xff] %v822
    %827 = vst [vmem:[#allocation9 + $0x8] sm:$0xff] %v823
    %828 = vst [vmem:[#allocation9 + $0x10] sm:$0xff] %v824
    %829 = vst [vmem:[#allocation9 + $0x18] sm:$0xff] %v825
    // Predicated region
    $region42: #{tpu_custom_call.1} parent=1 // pred_check
      _
    $region43: #{tpu_custom_call.1} parent=1 // pred_check_branch
      %831 = sbr.rel (0) target = $region45
    $region44: #{tpu_custom_call.1} parent=1 // pred_region
      %833 = vsyncadd [#allocation5], 0
      %s834 = sshll.u32 [#allocation9], 4
      %s835 = int_to_ptr.vmem [resolvable:$true] %s834
      %s836 = sshll.u32 %s7, 4
      %s837 = int_to_ptr.hbm [resolvable:$true] %s836
      %842 = dma.vmem_to_hbm [thread:$0]  %s835, 512, %s837, [#allocation5], 128, 128, 8
    $region45: #{tpu_custom_call.1} parent=1 // pred_fallthru
      _
    // Predicated region
    $region46: #{tpu_custom_call.1} parent=1 // pred_check
      _
    $region47: #{tpu_custom_call.1} parent=1 // pred_check_branch
      %844 = sbr.rel (0) target = $region49
    $region48: #{tpu_custom_call.1} parent=1 // pred_region
      %846 = dma.done [#allocation5], 512
    $region49: #{tpu_custom_call.1} parent=1 // pred_fallthru
      _
    %847 = vsyncpa [#allocation4], 1
    %848 = vsyncpa [#allocation7], 1
    %849 = vsyncpa [#allocation5], 1

</llo_original>
